<compile_context>
chip_gen: v7x
topology: tpu7x:2x2x1
jax: 0.10.0
libtpu: 0.0.40
codegen_flags: <defaults>
</compile_context>

<pallas_src>
import jax
import jax.numpy as jnp
from jax import lax
from jax.experimental import pallas as pl
from jax.experimental.pallas import tpu as pltpu


def _partial_logits(fids, bias_row, v_start):
    """sum_f bias[fids[b, f]] restricted to this vocab tile.

    fids     : [tb, F] int32   feature ids for this batch tile
    bias_row : [1, tv] float32 bias table slice for this vocab tile
    v_start  : scalar int32    first vocab id of this tile
    returns  : [1, tb] float32 partial logits (lane-dense)
    """
    tb, F = fids.shape
    tv = bias_row.shape[1]

    # Hoisted out of the F loop (JAX does not CSE broadcast_in_dim).
    iota_v = lax.broadcasted_iota(jnp.int32, (1, tv), 1) + v_start   # [1, tv]
    bias_b = jnp.broadcast_to(bias_row, (tb, tv))                    # [tb, tv]

    # Unrolled F loop (F is small and static).  A static Python loop gives
    # concrete lane-slice indices per step; one compare + select + add over a
    # single [tb, tv] accumulator -- no [tb, F, tv] intermediate.
    acc = jnp.zeros((tb, tv), jnp.float32)
    for f in range(F):
        eq = fids[:, f:f + 1] == iota_v           # [tb, tv] bool
        acc = acc + jnp.where(eq, bias_b, 0.0)    # fused select (no convert+mul)

    logits = jnp.sum(acc, axis=-1)                # single lane reduce -> [tb]
    return logits[None, :]                        # [1, tb]


def _lr_infer_kernel(fids_ref, bias_ref, pred_ref):
    """Inference: prediction only (no label DMA / squared-error work)."""
    j = pl.program_id(1)
    tv = bias_ref.shape[1]
    partial = _partial_logits(fids_ref[...], bias_ref[...], j * tv)

    @pl.when(j == 0)
    def _():
        pred_ref[...] = partial

    @pl.when(j > 0)
    def _():
        pred_ref[...] = pred_ref[...] + partial


def _lr_train_kernel(fids_ref, label_ref, bias_ref, pred_ref, sqerr_ref):
    """Training: prediction + per-sample squared error (summed in wrapper)."""
    j = pl.program_id(1)
    tv = bias_ref.shape[1]
    partial = _partial_logits(fids_ref[...], bias_ref[...], j * tv)

    @pl.when(j == 0)
    def _():
        pred_ref[...] = partial

    @pl.when(j > 0)
    def _():
        pred_ref[...] = pred_ref[...] + partial

    @pl.when(j == pl.num_programs(1) - 1)
    def _():
        diff = pred_ref[...] - label_ref[...]
        sqerr_ref[...] = diff * diff


def _pick_batch_tile(B):
    if B <= 256:
        return B            # single full-batch tile (full-dim block is legal)
    # Lane-dense tiles with >= 2 batch steps so both v7x TensorCores get work.
    for cand in (1024, 512, 384, 256, 128):
        if B % cand == 0 and B // cand >= 2:
            return cand
    return B                # fallback: one full-batch tile


def _pick_vocab_tile(V):
    if V <= 1024:
        return V
    for cand in (1024, 512, 256, 128):
        if V % cand == 0:
            return cand
    return V


def lr_model_v2_forward(fids_batch, emb_table, bias_table, label=None,
                        tb=None, tv=None):
    """Pallas forward for LRModelV2.

    `emb_table` is accepted for interface parity with FidEmbeddingV2 but is
    not read: the PyTorch forward's outputs depend only on the bias table.
    """
    del emb_table  # intentionally unused (embedding path dead in the forward)

    fids_batch = jnp.asarray(fids_batch, jnp.int32)
    B, F = fids_batch.shape
    V = int(bias_table.shape[0])

    if tb is None:
        tb = _pick_batch_tile(B)
    if tv is None:
        tv = _pick_vocab_tile(V)
    assert B % tb == 0, "batch must be divisible by the batch tile"
    assert tb == B or tb % 128 == 0, "batch tile: full batch or multiple of 128"
    assert V % tv == 0, "vocab must be divisible by the vocab tile"
    assert tv == V or tv % 128 == 0, "vocab tile: full vocab or multiple of 128"
    n_b, n_v = B // tb, V // tv

    bias_row = jnp.asarray(bias_table, jnp.float32).reshape(1, V)

    def run(single_buffer_bias):
        bias_kwargs = (dict(pipeline_mode=pl.Buffered(1))
                       if single_buffer_bias else {})
        bias_spec = pl.BlockSpec((1, tv), lambda i, j: (0, j), **bias_kwargs)
        fids_spec = pl.BlockSpec((tb, F), lambda i, j: (i, 0))
        row_spec = pl.BlockSpec((1, tb), lambda i, j: (0, i))
        cparams = pltpu.CompilerParams(
            dimension_semantics=("parallel", "arbitrary"))

        if label is None:
            pred_row = pl.pallas_call(
                _lr_infer_kernel,
                out_shape=jax.ShapeDtypeStruct((1, B), jnp.float32),
                grid_spec=pltpu.PrefetchScalarGridSpec(
                    num_scalar_prefetch=0,
                    grid=(n_b, n_v),
                    in_specs=[fids_spec, bias_spec],
                    out_specs=row_spec),
                compiler_params=cparams,
            )(fids_batch, bias_row)
            return pred_row, None

        label_row = jnp.asarray(label, jnp.float32).reshape(1, B)
        pred_row, sqerr_row = pl.pallas_call(
            _lr_train_kernel,
            out_shape=(jax.ShapeDtypeStruct((1, B), jnp.float32),
                       jax.ShapeDtypeStruct((1, B), jnp.float32)),
            grid_spec=pltpu.PrefetchScalarGridSpec(
                num_scalar_prefetch=0,
                grid=(n_b, n_v),
                in_specs=[fids_spec, row_spec, bias_spec],
                out_specs=[row_spec, row_spec]),
            compiler_params=cparams,
        )(fids_batch, label_row, bias_row)
        return pred_row, sqerr_row

    # Single-buffer the bias row only when it is grid-invariant (one vocab
    # tile); fall back to default double-buffering if pl.Buffered(1) is
    # rejected by the installed JAX build.
    want_single_buffer = (n_v == 1)
    try:
        pred_row, sqerr_row = run(want_single_buffer)
    except Exception:
        if not want_single_buffer:
            raise
        pred_row, sqerr_row = run(False)

    prediction = pred_row[0, :]                   # .squeeze() -> [B]
    if label is None:
        return prediction
    loss = jnp.sum(sqerr_row)                     # mse_loss(..., reduction='sum')
    return prediction, loss


if __name__ == "__main__":
    # Small, deterministic synthetic setup.
    B, F, V, D = 8, 16, 128, 8       # batch, fids-per-sample, vocab, embed dim

    key = jax.random.PRNGKey(0)
    k_fid, k_emb, k_bias, k_lbl = jax.random.split(key, 4)

    fids_batch = jax.random.randint(k_fid, (B, F), 0, V, dtype=jnp.int32)
    emb_table = jax.random.normal(k_emb, (V, D), dtype=jnp.float32) * 0.01
    bias_table = jax.random.normal(k_bias, (V, 1), dtype=jnp.float32) * 0.1
    label = jax.random.normal(k_lbl, (B,), dtype=jnp.float32)

    # Inference path (label=None): prediction only.
    pred = lr_model_v2_forward(fids_batch, emb_table, bias_table)
    pred = jax.block_until_ready(pred)

    # Training path: (prediction, loss).
    pred2, loss = lr_model_v2_forward(fids_batch, emb_table, bias_table,
                                      label=label)
    pred2, loss = jax.block_until_ready((pred2, loss))

    # Pure-JAX reference check.
    bias_gathered = jnp.asarray(bias_table)[fids_batch]       # [B, F, 1]
    pred_ref = jnp.sum(bias_gathered, axis=1)[:, 0]           # [B]
    loss_ref = jnp.sum((pred_ref - label) ** 2)

    assert pred.shape == (B,)
    assert jnp.allclose(pred, pred_ref, atol=1e-5), "prediction mismatch"
    assert jnp.allclose(pred2, pred_ref, atol=1e-5), "prediction mismatch (label path)"
    assert jnp.allclose(loss, loss_ref, atol=1e-4), "loss mismatch"

    print("KERNEL_OK")
</pallas_src>

<mosaic_0001>
module attributes {stable_mosaic.version = 11 : i64} {
  func.func @_lr_infer_kernel(%arg0: i32, %arg1: i32, %arg2: memref<8x16xi32, #tpu.memory_space<vmem>>, %arg3: memref<1x128xf32, #tpu.memory_space<vmem>>, %arg4: memref<1x8xf32, #tpu.memory_space<vmem>>) attributes {dimension_semantics = [#tpu.dimension_semantics<parallel>, #tpu.dimension_semantics<arbitrary>], iteration_bounds = array<i64: 1, 1>, scalar_prefetch = 0 : i64, scratch_operands = 0 : i64, tpu.core_type = #tpu.core_type<tc>, window_params = [{transform_indices = @transform_0, window_bounds = array<i64: 8, 16>}, {pipeline_mode = #tpu.pipeline_mode<synchronous>, transform_indices = @transform_1, window_bounds = array<i64: 1, 128>}, {transform_indices = @transform_2, window_bounds = array<i64: 1, 8>}]} {
    %c0 = arith.constant 0 : index
    %c0_0 = arith.constant 0 : index
    %0 = vector.load %arg2[%c0, %c0_0] : memref<8x16xi32, #tpu.memory_space<vmem>>, vector<8x16xi32>
    %c0_1 = arith.constant 0 : index
    %c0_2 = arith.constant 0 : index
    %1 = vector.load %arg3[%c0_1, %c0_2] : memref<1x128xf32, #tpu.memory_space<vmem>>, vector<1x128xf32>
    %c128_i32 = arith.constant 128 : i32
    %2 = arith.muli %arg1, %c128_i32 : i32
    %3 = tpu.iota {dimensions = array<i32: 1>} : vector<1x128xi32>
    %4 = vector.broadcast %2 : i32 to vector<1x128xi32>
    %5 = arith.addi %3, %4 : vector<1x128xi32>
    %6 = vector.shape_cast %1 : vector<1x128xf32> to vector<1x128xf32>
    %7 = vector.broadcast %6 : vector<1x128xf32> to vector<8x128xf32>
    %cst = arith.constant 0.000000e+00 : f32
    %8 = vector.broadcast %cst : f32 to vector<8x128xf32>
    %9 = vector.extract_strided_slice %0 {offsets = [0, 0], sizes = [8, 1], strides = [1, 1]} : vector<8x16xi32> to vector<8x1xi32>
    %10 = vector.broadcast %9 : vector<8x1xi32> to vector<8x128xi32>
    %11 = vector.broadcast %5 : vector<1x128xi32> to vector<8x128xi32>
    %12 = arith.cmpi eq, %10, %11 : vector<8x128xi32>
    %cst_3 = arith.constant 0.000000e+00 : f32
    %13 = vector.broadcast %cst_3 : f32 to vector<8x128xf32>
    %14 = arith.select %12, %7, %13 : vector<8x128xi1>, vector<8x128xf32>
    %15 = arith.addf %8, %14 : vector<8x128xf32>
    %16 = vector.extract_strided_slice %0 {offsets = [0, 1], sizes = [8, 1], strides = [1, 1]} : vector<8x16xi32> to vector<8x1xi32>
    %17 = vector.broadcast %16 : vector<8x1xi32> to vector<8x128xi32>
    %18 = vector.broadcast %5 : vector<1x128xi32> to vector<8x128xi32>
    %19 = arith.cmpi eq, %17, %18 : vector<8x128xi32>
    %cst_4 = arith.constant 0.000000e+00 : f32
    %20 = vector.broadcast %cst_4 : f32 to vector<8x128xf32>
    %21 = arith.select %19, %7, %20 : vector<8x128xi1>, vector<8x128xf32>
    %22 = arith.addf %15, %21 : vector<8x128xf32>
    %23 = vector.extract_strided_slice %0 {offsets = [0, 2], sizes = [8, 1], strides = [1, 1]} : vector<8x16xi32> to vector<8x1xi32>
    %24 = vector.broadcast %23 : vector<8x1xi32> to vector<8x128xi32>
    %25 = vector.broadcast %5 : vector<1x128xi32> to vector<8x128xi32>
    %26 = arith.cmpi eq, %24, %25 : vector<8x128xi32>
    %cst_5 = arith.constant 0.000000e+00 : f32
    %27 = vector.broadcast %cst_5 : f32 to vector<8x128xf32>
    %28 = arith.select %26, %7, %27 : vector<8x128xi1>, vector<8x128xf32>
    %29 = arith.addf %22, %28 : vector<8x128xf32>
    %30 = vector.extract_strided_slice %0 {offsets = [0, 3], sizes = [8, 1], strides = [1, 1]} : vector<8x16xi32> to vector<8x1xi32>
    %31 = vector.broadcast %30 : vector<8x1xi32> to vector<8x128xi32>
    %32 = vector.broadcast %5 : vector<1x128xi32> to vector<8x128xi32>
    %33 = arith.cmpi eq, %31, %32 : vector<8x128xi32>
    %cst_6 = arith.constant 0.000000e+00 : f32
    %34 = vector.broadcast %cst_6 : f32 to vector<8x128xf32>
    %35 = arith.select %33, %7, %34 : vector<8x128xi1>, vector<8x128xf32>
    %36 = arith.addf %29, %35 : vector<8x128xf32>
    %37 = vector.extract_strided_slice %0 {offsets = [0, 4], sizes = [8, 1], strides = [1, 1]} : vector<8x16xi32> to vector<8x1xi32>
    %38 = vector.broadcast %37 : vector<8x1xi32> to vector<8x128xi32>
    %39 = vector.broadcast %5 : vector<1x128xi32> to vector<8x128xi32>
    %40 = arith.cmpi eq, %38, %39 : vector<8x128xi32>
    %cst_7 = arith.constant 0.000000e+00 : f32
    %41 = vector.broadcast %cst_7 : f32 to vector<8x128xf32>
    %42 = arith.select %40, %7, %41 : vector<8x128xi1>, vector<8x128xf32>
    %43 = arith.addf %36, %42 : vector<8x128xf32>
    %44 = vector.extract_strided_slice %0 {offsets = [0, 5], sizes = [8, 1], strides = [1, 1]} : vector<8x16xi32> to vector<8x1xi32>
    %45 = vector.broadcast %44 : vector<8x1xi32> to vector<8x128xi32>
    %46 = vector.broadcast %5 : vector<1x128xi32> to vector<8x128xi32>
    %47 = arith.cmpi eq, %45, %46 : vector<8x128xi32>
    %cst_8 = arith.constant 0.000000e+00 : f32
    %48 = vector.broadcast %cst_8 : f32 to vector<8x128xf32>
    %49 = arith.select %47, %7, %48 : vector<8x128xi1>, vector<8x128xf32>
    %50 = arith.addf %43, %49 : vector<8x128xf32>
    %51 = vector.extract_strided_slice %0 {offsets = [0, 6], sizes = [8, 1], strides = [1, 1]} : vector<8x16xi32> to vector<8x1xi32>
    %52 = vector.broadcast %51 : vector<8x1xi32> to vector<8x128xi32>
    %53 = vector.broadcast %5 : vector<1x128xi32> to vector<8x128xi32>
    %54 = arith.cmpi eq, %52, %53 : vector<8x128xi32>
    %cst_9 = arith.constant 0.000000e+00 : f32
    %55 = vector.broadcast %cst_9 : f32 to vector<8x128xf32>
    %56 = arith.select %54, %7, %55 : vector<8x128xi1>, vector<8x128xf32>
    %57 = arith.addf %50, %56 : vector<8x128xf32>
    %58 = vector.extract_strided_slice %0 {offsets = [0, 7], sizes = [8, 1], strides = [1, 1]} : vector<8x16xi32> to vector<8x1xi32>
    %59 = vector.broadcast %58 : vector<8x1xi32> to vector<8x128xi32>
    %60 = vector.broadcast %5 : vector<1x128xi32> to vector<8x128xi32>
    %61 = arith.cmpi eq, %59, %60 : vector<8x128xi32>
    %cst_10 = arith.constant 0.000000e+00 : f32
    %62 = vector.broadcast %cst_10 : f32 to vector<8x128xf32>
    %63 = arith.select %61, %7, %62 : vector<8x128xi1>, vector<8x128xf32>
    %64 = arith.addf %57, %63 : vector<8x128xf32>
    %65 = vector.extract_strided_slice %0 {offsets = [0, 8], sizes = [8, 1], strides = [1, 1]} : vector<8x16xi32> to vector<8x1xi32>
    %66 = vector.broadcast %65 : vector<8x1xi32> to vector<8x128xi32>
    %67 = vector.broadcast %5 : vector<1x128xi32> to vector<8x128xi32>
    %68 = arith.cmpi eq, %66, %67 : vector<8x128xi32>
    %cst_11 = arith.constant 0.000000e+00 : f32
    %69 = vector.broadcast %cst_11 : f32 to vector<8x128xf32>
    %70 = arith.select %68, %7, %69 : vector<8x128xi1>, vector<8x128xf32>
    %71 = arith.addf %64, %70 : vector<8x128xf32>
    %72 = vector.extract_strided_slice %0 {offsets = [0, 9], sizes = [8, 1], strides = [1, 1]} : vector<8x16xi32> to vector<8x1xi32>
    %73 = vector.broadcast %72 : vector<8x1xi32> to vector<8x128xi32>
    %74 = vector.broadcast %5 : vector<1x128xi32> to vector<8x128xi32>
    %75 = arith.cmpi eq, %73, %74 : vector<8x128xi32>
    %cst_12 = arith.constant 0.000000e+00 : f32
    %76 = vector.broadcast %cst_12 : f32 to vector<8x128xf32>
    %77 = arith.select %75, %7, %76 : vector<8x128xi1>, vector<8x128xf32>
    %78 = arith.addf %71, %77 : vector<8x128xf32>
    %79 = vector.extract_strided_slice %0 {offsets = [0, 10], sizes = [8, 1], strides = [1, 1]} : vector<8x16xi32> to vector<8x1xi32>
    %80 = vector.broadcast %79 : vector<8x1xi32> to vector<8x128xi32>
    %81 = vector.broadcast %5 : vector<1x128xi32> to vector<8x128xi32>
    %82 = arith.cmpi eq, %80, %81 : vector<8x128xi32>
    %cst_13 = arith.constant 0.000000e+00 : f32
    %83 = vector.broadcast %cst_13 : f32 to vector<8x128xf32>
    %84 = arith.select %82, %7, %83 : vector<8x128xi1>, vector<8x128xf32>
    %85 = arith.addf %78, %84 : vector<8x128xf32>
    %86 = vector.extract_strided_slice %0 {offsets = [0, 11], sizes = [8, 1], strides = [1, 1]} : vector<8x16xi32> to vector<8x1xi32>
    %87 = vector.broadcast %86 : vector<8x1xi32> to vector<8x128xi32>
    %88 = vector.broadcast %5 : vector<1x128xi32> to vector<8x128xi32>
    %89 = arith.cmpi eq, %87, %88 : vector<8x128xi32>
    %cst_14 = arith.constant 0.000000e+00 : f32
    %90 = vector.broadcast %cst_14 : f32 to vector<8x128xf32>
    %91 = arith.select %89, %7, %90 : vector<8x128xi1>, vector<8x128xf32>
    %92 = arith.addf %85, %91 : vector<8x128xf32>
    %93 = vector.extract_strided_slice %0 {offsets = [0, 12], sizes = [8, 1], strides = [1, 1]} : vector<8x16xi32> to vector<8x1xi32>
    %94 = vector.broadcast %93 : vector<8x1xi32> to vector<8x128xi32>
    %95 = vector.broadcast %5 : vector<1x128xi32> to vector<8x128xi32>
    %96 = arith.cmpi eq, %94, %95 : vector<8x128xi32>
    %cst_15 = arith.constant 0.000000e+00 : f32
    %97 = vector.broadcast %cst_15 : f32 to vector<8x128xf32>
    %98 = arith.select %96, %7, %97 : vector<8x128xi1>, vector<8x128xf32>
    %99 = arith.addf %92, %98 : vector<8x128xf32>
    %100 = vector.extract_strided_slice %0 {offsets = [0, 13], sizes = [8, 1], strides = [1, 1]} : vector<8x16xi32> to vector<8x1xi32>
    %101 = vector.broadcast %100 : vector<8x1xi32> to vector<8x128xi32>
    %102 = vector.broadcast %5 : vector<1x128xi32> to vector<8x128xi32>
    %103 = arith.cmpi eq, %101, %102 : vector<8x128xi32>
    %cst_16 = arith.constant 0.000000e+00 : f32
    %104 = vector.broadcast %cst_16 : f32 to vector<8x128xf32>
    %105 = arith.select %103, %7, %104 : vector<8x128xi1>, vector<8x128xf32>
    %106 = arith.addf %99, %105 : vector<8x128xf32>
    %107 = vector.extract_strided_slice %0 {offsets = [0, 14], sizes = [8, 1], strides = [1, 1]} : vector<8x16xi32> to vector<8x1xi32>
    %108 = vector.broadcast %107 : vector<8x1xi32> to vector<8x128xi32>
    %109 = vector.broadcast %5 : vector<1x128xi32> to vector<8x128xi32>
    %110 = arith.cmpi eq, %108, %109 : vector<8x128xi32>
    %cst_17 = arith.constant 0.000000e+00 : f32
    %111 = vector.broadcast %cst_17 : f32 to vector<8x128xf32>
    %112 = arith.select %110, %7, %111 : vector<8x128xi1>, vector<8x128xf32>
    %113 = arith.addf %106, %112 : vector<8x128xf32>
    %114 = vector.extract_strided_slice %0 {offsets = [0, 15], sizes = [8, 1], strides = [1, 1]} : vector<8x16xi32> to vector<8x1xi32>
    %115 = vector.broadcast %114 : vector<8x1xi32> to vector<8x128xi32>
    %116 = vector.broadcast %5 : vector<1x128xi32> to vector<8x128xi32>
    %117 = arith.cmpi eq, %115, %116 : vector<8x128xi32>
    %cst_18 = arith.constant 0.000000e+00 : f32
    %118 = vector.broadcast %cst_18 : f32 to vector<8x128xf32>
    %119 = arith.select %117, %7, %118 : vector<8x128xi1>, vector<8x128xf32>
    %120 = arith.addf %113, %119 : vector<8x128xf32>
    %cst_19 = arith.constant dense<0.000000e+00> : vector<8xf32>
    %121 = vector.multi_reduction <add>, %120, %cst_19 [1] : vector<8x128xf32> to vector<8xf32>
    %122 = vector.shape_cast %121 : vector<8xf32> to vector<1x8xf32>
    %c0_i32 = arith.constant 0 : i32
    %123 = arith.cmpi eq, %arg1, %c0_i32 : i32
    %124 = arith.extui %123 : i1 to i32
    %c0_i32_20 = arith.constant 0 : i32
    %125 = arith.cmpi ne, %124, %c0_i32_20 : i32
    scf.if %125 {
      %c0_23 = arith.constant 0 : index
      %c0_24 = arith.constant 0 : index
      %129 = vector.load %arg4[%c0_23, %c0_24] : memref<1x8xf32, #tpu.memory_space<vmem>>, vector<1x8xf32>
      tpu.vector_store %arg4[%c0_23, %c0_24], %122 {strides = array<i32>} : memref<1x8xf32, #tpu.memory_space<vmem>>, vector<1x8xf32>,
    } else {
    }
    %c0_i32_21 = arith.constant 0 : i32
    %126 = arith.cmpi sgt, %arg1, %c0_i32_21 : i32
    %127 = arith.extui %126 : i1 to i32
    %c0_i32_22 = arith.constant 0 : i32
    %128 = arith.cmpi ne, %127, %c0_i32_22 : i32
    scf.if %128 {
      %c0_23 = arith.constant 0 : index
      %c0_24 = arith.constant 0 : index
      %129 = vector.load %arg4[%c0_23, %c0_24] : memref<1x8xf32, #tpu.memory_space<vmem>>, vector<1x8xf32>
      %130 = arith.addf %129, %122 : vector<1x8xf32>
      %c0_25 = arith.constant 0 : index
      %c0_26 = arith.constant 0 : index
      %131 = vector.load %arg4[%c0_25, %c0_26] : memref<1x8xf32, #tpu.memory_space<vmem>>, vector<1x8xf32>
      tpu.vector_store %arg4[%c0_25, %c0_26], %130 {strides = array<i32>} : memref<1x8xf32, #tpu.memory_space<vmem>>, vector<1x8xf32>,
    } else {
    }
    return
  }
  func.func @transform_0(%arg0: i32, %arg1: i32) -> (i32, i32) {
    %c0_i32 = arith.constant 0 : i32
    %c0_i32_0 = arith.constant 0 : i32
    return %arg0, %c0_i32 : i32, i32
  }
  func.func @transform_1(%arg0: i32, %arg1: i32) -> (i32, i32) {
    %c0_i32 = arith.constant 0 : i32
    %c0_i32_0 = arith.constant 0 : i32
    return %c0_i32, %arg1 : i32, i32
  }
  func.func @transform_2(%arg0: i32, %arg1: i32) -> (i32, i32) {
    %c0_i32 = arith.constant 0 : i32
    %c0_i32_0 = arith.constant 0 : i32
    return %c0_i32, %arg0 : i32, i32
  }
}

module attributes {stable_mosaic.version = 11 : i64} {
  func.func @_lr_infer_kernel(%arg0: i32, %arg1: i32, %arg2: memref<8x16xi32, #tpu.memory_space<vmem>>, %arg3: memref<1x128xf32, #tpu.memory_space<vmem>>, %arg4: memref<1x8xf32, #tpu.memory_space<vmem>>) attributes {dimension_semantics = [#tpu.dimension_semantics<parallel>, #tpu.dimension_semantics<arbitrary>], iteration_bounds = array<i64: 1, 1>, scalar_prefetch = 0 : i64, scratch_operands = 0 : i64, tpu.core_type = #tpu.core_type<tc>, window_params = [{transform_indices = @transform_0, window_bounds = array<i64: 8, 16>}, {transform_indices = @transform_1, window_bounds = array<i64: 1, 128>}, {transform_indices = @transform_2, window_bounds = array<i64: 1, 8>}]} {
    %c0 = arith.constant 0 : index
    %c0_0 = arith.constant 0 : index
    %0 = vector.load %arg2[%c0, %c0_0] : memref<8x16xi32, #tpu.memory_space<vmem>>, vector<8x16xi32>
    %c0_1 = arith.constant 0 : index
    %c0_2 = arith.constant 0 : index
    %1 = vector.load %arg3[%c0_1, %c0_2] : memref<1x128xf32, #tpu.memory_space<vmem>>, vector<1x128xf32>
    %c128_i32 = arith.constant 128 : i32
    %2 = arith.muli %arg1, %c128_i32 : i32
    %3 = tpu.iota {dimensions = array<i32: 1>} : vector<1x128xi32>
    %4 = vector.broadcast %2 : i32 to vector<1x128xi32>
    %5 = arith.addi %3, %4 : vector<1x128xi32>
    %6 = vector.shape_cast %1 : vector<1x128xf32> to vector<1x128xf32>
    %7 = vector.broadcast %6 : vector<1x128xf32> to vector<8x128xf32>
    %cst = arith.constant 0.000000e+00 : f32
    %8 = vector.broadcast %cst : f32 to vector<8x128xf32>
    %9 = vector.extract_strided_slice %0 {offsets = [0, 0], sizes = [8, 1], strides = [1, 1]} : vector<8x16xi32> to vector<8x1xi32>
    %10 = vector.broadcast %9 : vector<8x1xi32> to vector<8x128xi32>
    %11 = vector.broadcast %5 : vector<1x128xi32> to vector<8x128xi32>
    %12 = arith.cmpi eq, %10, %11 : vector<8x128xi32>
    %cst_3 = arith.constant 0.000000e+00 : f32
    %13 = vector.broadcast %cst_3 : f32 to vector<8x128xf32>
    %14 = arith.select %12, %7, %13 : vector<8x128xi1>, vector<8x128xf32>
    %15 = arith.addf %8, %14 : vector<8x128xf32>
    %16 = vector.extract_strided_slice %0 {offsets = [0, 1], sizes = [8, 1], strides = [1, 1]} : vector<8x16xi32> to vector<8x1xi32>
    %17 = vector.broadcast %16 : vector<8x1xi32> to vector<8x128xi32>
    %18 = vector.broadcast %5 : vector<1x128xi32> to vector<8x128xi32>
    %19 = arith.cmpi eq, %17, %18 : vector<8x128xi32>
    %cst_4 = arith.constant 0.000000e+00 : f32
    %20 = vector.broadcast %cst_4 : f32 to vector<8x128xf32>
    %21 = arith.select %19, %7, %20 : vector<8x128xi1>, vector<8x128xf32>
    %22 = arith.addf %15, %21 : vector<8x128xf32>
    %23 = vector.extract_strided_slice %0 {offsets = [0, 2], sizes = [8, 1], strides = [1, 1]} : vector<8x16xi32> to vector<8x1xi32>
    %24 = vector.broadcast %23 : vector<8x1xi32> to vector<8x128xi32>
    %25 = vector.broadcast %5 : vector<1x128xi32> to vector<8x128xi32>
    %26 = arith.cmpi eq, %24, %25 : vector<8x128xi32>
    %cst_5 = arith.constant 0.000000e+00 : f32
    %27 = vector.broadcast %cst_5 : f32 to vector<8x128xf32>
    %28 = arith.select %26, %7, %27 : vector<8x128xi1>, vector<8x128xf32>
    %29 = arith.addf %22, %28 : vector<8x128xf32>
    %30 = vector.extract_strided_slice %0 {offsets = [0, 3], sizes = [8, 1], strides = [1, 1]} : vector<8x16xi32> to vector<8x1xi32>
    %31 = vector.broadcast %30 : vector<8x1xi32> to vector<8x128xi32>
    %32 = vector.broadcast %5 : vector<1x128xi32> to vector<8x128xi32>
    %33 = arith.cmpi eq, %31, %32 : vector<8x128xi32>
    %cst_6 = arith.constant 0.000000e+00 : f32
    %34 = vector.broadcast %cst_6 : f32 to vector<8x128xf32>
    %35 = arith.select %33, %7, %34 : vector<8x128xi1>, vector<8x128xf32>
    %36 = arith.addf %29, %35 : vector<8x128xf32>
    %37 = vector.extract_strided_slice %0 {offsets = [0, 4], sizes = [8, 1], strides = [1, 1]} : vector<8x16xi32> to vector<8x1xi32>
    %38 = vector.broadcast %37 : vector<8x1xi32> to vector<8x128xi32>
    %39 = vector.broadcast %5 : vector<1x128xi32> to vector<8x128xi32>
    %40 = arith.cmpi eq, %38, %39 : vector<8x128xi32>
    %cst_7 = arith.constant 0.000000e+00 : f32
    %41 = vector.broadcast %cst_7 : f32 to vector<8x128xf32>
    %42 = arith.select %40, %7, %41 : vector<8x128xi1>, vector<8x128xf32>
    %43 = arith.addf %36, %42 : vector<8x128xf32>
    %44 = vector.extract_strided_slice %0 {offsets = [0, 5], sizes = [8, 1], strides = [1, 1]} : vector<8x16xi32> to vector<8x1xi32>
    %45 = vector.broadcast %44 : vector<8x1xi32> to vector<8x128xi32>
    %46 = vector.broadcast %5 : vector<1x128xi32> to vector<8x128xi32>
    %47 = arith.cmpi eq, %45, %46 : vector<8x128xi32>
    %cst_8 = arith.constant 0.000000e+00 : f32
    %48 = vector.broadcast %cst_8 : f32 to vector<8x128xf32>
    %49 = arith.select %47, %7, %48 : vector<8x128xi1>, vector<8x128xf32>
    %50 = arith.addf %43, %49 : vector<8x128xf32>
    %51 = vector.extract_strided_slice %0 {offsets = [0, 6], sizes = [8, 1], strides = [1, 1]} : vector<8x16xi32> to vector<8x1xi32>
    %52 = vector.broadcast %51 : vector<8x1xi32> to vector<8x128xi32>
    %53 = vector.broadcast %5 : vector<1x128xi32> to vector<8x128xi32>
    %54 = arith.cmpi eq, %52, %53 : vector<8x128xi32>
    %cst_9 = arith.constant 0.000000e+00 : f32
    %55 = vector.broadcast %cst_9 : f32 to vector<8x128xf32>
    %56 = arith.select %54, %7, %55 : vector<8x128xi1>, vector<8x128xf32>
    %57 = arith.addf %50, %56 : vector<8x128xf32>
    %58 = vector.extract_strided_slice %0 {offsets = [0, 7], sizes = [8, 1], strides = [1, 1]} : vector<8x16xi32> to vector<8x1xi32>
    %59 = vector.broadcast %58 : vector<8x1xi32> to vector<8x128xi32>
    %60 = vector.broadcast %5 : vector<1x128xi32> to vector<8x128xi32>
    %61 = arith.cmpi eq, %59, %60 : vector<8x128xi32>
    %cst_10 = arith.constant 0.000000e+00 : f32
    %62 = vector.broadcast %cst_10 : f32 to vector<8x128xf32>
    %63 = arith.select %61, %7, %62 : vector<8x128xi1>, vector<8x128xf32>
    %64 = arith.addf %57, %63 : vector<8x128xf32>
    %65 = vector.extract_strided_slice %0 {offsets = [0, 8], sizes = [8, 1], strides = [1, 1]} : vector<8x16xi32> to vector<8x1xi32>
    %66 = vector.broadcast %65 : vector<8x1xi32> to vector<8x128xi32>
    %67 = vector.broadcast %5 : vector<1x128xi32> to vector<8x128xi32>
    %68 = arith.cmpi eq, %66, %67 : vector<8x128xi32>
    %cst_11 = arith.constant 0.000000e+00 : f32
    %69 = vector.broadcast %cst_11 : f32 to vector<8x128xf32>
    %70 = arith.select %68, %7, %69 : vector<8x128xi1>, vector<8x128xf32>
    %71 = arith.addf %64, %70 : vector<8x128xf32>
    %72 = vector.extract_strided_slice %0 {offsets = [0, 9], sizes = [8, 1], strides = [1, 1]} : vector<8x16xi32> to vector<8x1xi32>
    %73 = vector.broadcast %72 : vector<8x1xi32> to vector<8x128xi32>
    %74 = vector.broadcast %5 : vector<1x128xi32> to vector<8x128xi32>
    %75 = arith.cmpi eq, %73, %74 : vector<8x128xi32>
    %cst_12 = arith.constant 0.000000e+00 : f32
    %76 = vector.broadcast %cst_12 : f32 to vector<8x128xf32>
    %77 = arith.select %75, %7, %76 : vector<8x128xi1>, vector<8x128xf32>
    %78 = arith.addf %71, %77 : vector<8x128xf32>
    %79 = vector.extract_strided_slice %0 {offsets = [0, 10], sizes = [8, 1], strides = [1, 1]} : vector<8x16xi32> to vector<8x1xi32>
    %80 = vector.broadcast %79 : vector<8x1xi32> to vector<8x128xi32>
    %81 = vector.broadcast %5 : vector<1x128xi32> to vector<8x128xi32>
    %82 = arith.cmpi eq, %80, %81 : vector<8x128xi32>
    %cst_13 = arith.constant 0.000000e+00 : f32
    %83 = vector.broadcast %cst_13 : f32 to vector<8x128xf32>
    %84 = arith.select %82, %7, %83 : vector<8x128xi1>, vector<8x128xf32>
    %85 = arith.addf %78, %84 : vector<8x128xf32>
    %86 = vector.extract_strided_slice %0 {offsets = [0, 11], sizes = [8, 1], strides = [1, 1]} : vector<8x16xi32> to vector<8x1xi32>
    %87 = vector.broadcast %86 : vector<8x1xi32> to vector<8x128xi32>
    %88 = vector.broadcast %5 : vector<1x128xi32> to vector<8x128xi32>
    %89 = arith.cmpi eq, %87, %88 : vector<8x128xi32>
    %cst_14 = arith.constant 0.000000e+00 : f32
    %90 = vector.broadcast %cst_14 : f32 to vector<8x128xf32>
    %91 = arith.select %89, %7, %90 : vector<8x128xi1>, vector<8x128xf32>
    %92 = arith.addf %85, %91 : vector<8x128xf32>
    %93 = vector.extract_strided_slice %0 {offsets = [0, 12], sizes = [8, 1], strides = [1, 1]} : vector<8x16xi32> to vector<8x1xi32>
    %94 = vector.broadcast %93 : vector<8x1xi32> to vector<8x128xi32>
    %95 = vector.broadcast %5 : vector<1x128xi32> to vector<8x128xi32>
    %96 = arith.cmpi eq, %94, %95 : vector<8x128xi32>
    %cst_15 = arith.constant 0.000000e+00 : f32
    %97 = vector.broadcast %cst_15 : f32 to vector<8x128xf32>
    %98 = arith.select %96, %7, %97 : vector<8x128xi1>, vector<8x128xf32>
    %99 = arith.addf %92, %98 : vector<8x128xf32>
    %100 = vector.extract_strided_slice %0 {offsets = [0, 13], sizes = [8, 1], strides = [1, 1]} : vector<8x16xi32> to vector<8x1xi32>
    %101 = vector.broadcast %100 : vector<8x1xi32> to vector<8x128xi32>
    %102 = vector.broadcast %5 : vector<1x128xi32> to vector<8x128xi32>
    %103 = arith.cmpi eq, %101, %102 : vector<8x128xi32>
    %cst_16 = arith.constant 0.000000e+00 : f32
    %104 = vector.broadcast %cst_16 : f32 to vector<8x128xf32>
    %105 = arith.select %103, %7, %104 : vector<8x128xi1>, vector<8x128xf32>
    %106 = arith.addf %99, %105 : vector<8x128xf32>
    %107 = vector.extract_strided_slice %0 {offsets = [0, 14], sizes = [8, 1], strides = [1, 1]} : vector<8x16xi32> to vector<8x1xi32>
    %108 = vector.broadcast %107 : vector<8x1xi32> to vector<8x128xi32>
    %109 = vector.broadcast %5 : vector<1x128xi32> to vector<8x128xi32>
    %110 = arith.cmpi eq, %108, %109 : vector<8x128xi32>
    %cst_17 = arith.constant 0.000000e+00 : f32
    %111 = vector.broadcast %cst_17 : f32 to vector<8x128xf32>
    %112 = arith.select %110, %7, %111 : vector<8x128xi1>, vector<8x128xf32>
    %113 = arith.addf %106, %112 : vector<8x128xf32>
    %114 = vector.extract_strided_slice %0 {offsets = [0, 15], sizes = [8, 1], strides = [1, 1]} : vector<8x16xi32> to vector<8x1xi32>
    %115 = vector.broadcast %114 : vector<8x1xi32> to vector<8x128xi32>
    %116 = vector.broadcast %5 : vector<1x128xi32> to vector<8x128xi32>
    %117 = arith.cmpi eq, %115, %116 : vector<8x128xi32>
    %cst_18 = arith.constant 0.000000e+00 : f32
    %118 = vector.broadcast %cst_18 : f32 to vector<8x128xf32>
    %119 = arith.select %117, %7, %118 : vector<8x128xi1>, vector<8x128xf32>
    %120 = arith.addf %113, %119 : vector<8x128xf32>
    %cst_19 = arith.constant dense<0.000000e+00> : vector<8xf32>
    %121 = vector.multi_reduction <add>, %120, %cst_19 [1] : vector<8x128xf32> to vector<8xf32>
    %122 = vector.shape_cast %121 : vector<8xf32> to vector<1x8xf32>
    %c0_i32 = arith.constant 0 : i32
    %123 = arith.cmpi eq, %arg1, %c0_i32 : i32
    %124 = arith.extui %123 : i1 to i32
    %c0_i32_20 = arith.constant 0 : i32
    %125 = arith.cmpi ne, %124, %c0_i32_20 : i32
    scf.if %125 {
      %c0_23 = arith.constant 0 : index
      %c0_24 = arith.constant 0 : index
      %129 = vector.load %arg4[%c0_23, %c0_24] : memref<1x8xf32, #tpu.memory_space<vmem>>, vector<1x8xf32>
      tpu.vector_store %arg4[%c0_23, %c0_24], %122 {strides = array<i32>} : memref<1x8xf32, #tpu.memory_space<vmem>>, vector<1x8xf32>,
    } else {
    }
    %c0_i32_21 = arith.constant 0 : i32
    %126 = arith.cmpi sgt, %arg1, %c0_i32_21 : i32
    %127 = arith.extui %126 : i1 to i32
    %c0_i32_22 = arith.constant 0 : i32
    %128 = arith.cmpi ne, %127, %c0_i32_22 : i32
    scf.if %128 {
      %c0_23 = arith.constant 0 : index
      %c0_24 = arith.constant 0 : index
      %129 = vector.load %arg4[%c0_23, %c0_24] : memref<1x8xf32, #tpu.memory_space<vmem>>, vector<1x8xf32>
      %130 = arith.addf %129, %122 : vector<1x8xf32>
      %c0_25 = arith.constant 0 : index
      %c0_26 = arith.constant 0 : index
      %131 = vector.load %arg4[%c0_25, %c0_26] : memref<1x8xf32, #tpu.memory_space<vmem>>, vector<1x8xf32>
      tpu.vector_store %arg4[%c0_25, %c0_26], %130 {strides = array<i32>} : memref<1x8xf32, #tpu.memory_space<vmem>>, vector<1x8xf32>,
    } else {
    }
    return
  }
  func.func @transform_0(%arg0: i32, %arg1: i32) -> (i32, i32) {
    %c0_i32 = arith.constant 0 : i32
    %c0_i32_0 = arith.constant 0 : i32
    return %arg0, %c0_i32 : i32, i32
  }
  func.func @transform_1(%arg0: i32, %arg1: i32) -> (i32, i32) {
    %c0_i32 = arith.constant 0 : i32
    %c0_i32_0 = arith.constant 0 : i32
    return %c0_i32, %arg1 : i32, i32
  }
  func.func @transform_2(%arg0: i32, %arg1: i32) -> (i32, i32) {
    %c0_i32 = arith.constant 0 : i32
    %c0_i32_0 = arith.constant 0 : i32
    return %c0_i32, %arg0 : i32, i32
  }
}

</mosaic_0001>

<llo_original>
// kernel: tpu_custom_call.1
$region0: #{tpu_custom_call.1}
  #allocation0 [shape = 'u32[]', space=smem, size = 0x4, offset = 0x4, fixed_abs, tag = 'smem constant byte address 0x4 - core index']
  #allocation1 [shape = 'u32[144,128]{1,0:T(1,128)}', space=vmem, size = 0x12000, scoped, tag = 'internal scratch']
  %s0 = inlined_call_operand.hbm [shape: s32[8,16], index: 0, kind: input, shape index: {}]
  %s1 = inlined_call_operand.vmem [shape: f32[1,128], index: 1, kind: input, shape index: {}]
  %s2 = inlined_call_operand.hbm [shape: f32[1,8], index: 2, kind: output, shape index: {}]
  %s3 = sld [smem:[#allocation0]]
  $region30: #{tpu_custom_call.1} parent=0
    _
  %s5 = ssub.s32 1, %s3
  %s6 = scalar_select 0, %s5, %s3
  $region1: #{tpu_custom_call.1} parent=0
    #allocation2 [shape = 'u8[4096]{0}', space=vmem, size = 0x1000, scoped, tag = 'input window, operand 0, single buffered']
    #allocation3 [shape = 's32[1]{0}', space=sflag, size = 0x4, scoped, tag = 'scoped memory for tpu_custom_call.1']
    #allocation4 [shape = 's32[1]{0}', space=sflag, size = 0x4, scoped, tag = 'scoped memory for tpu_custom_call.1']
    #allocation5 [shape = 'u8[512]{0}', space=vmem, size = 0x400, scoped, tag = 'output window, operand 0, single buffered']
    %7 = vsyncpa [#allocation3], 0
    %8 = vsyncpa [#allocation4], 0
    // Predicated region
    $region2: #{tpu_custom_call.1} parent=1 // pred_check
      _
    $region3: #{tpu_custom_call.1} parent=1 // pred_check_branch
      %10 = sbr.rel (0) target = $region5
    $region4: #{tpu_custom_call.1} parent=1 // pred_region
      %s12 = ssub.s32 128, 128
      %13 = vsyncadd [#allocation3], %s12
      %s15 = sshll.u32 [#allocation2], 4
      %s16 = int_to_ptr.vmem [resolvable:$true] %s15
      %18 = dma.hbm_to_vmem [thread:$0]  %s0, 128, %s16, [#allocation3]
    $region5: #{tpu_custom_call.1} parent=1 // pred_fallthru
      _
    // Predicated region
    $region6: #{tpu_custom_call.1} parent=1 // pred_check
      _
    $region7: #{tpu_custom_call.1} parent=1 // pred_check_branch
      %20 = sbr.rel (0) target = $region9
    $region8: #{tpu_custom_call.1} parent=1 // pred_region
      _
    $region9: #{tpu_custom_call.1} parent=1 // pred_fallthru
      _
    // Predicated region
    $region10: #{tpu_custom_call.1} parent=1 // pred_check
      _
    $region11: #{tpu_custom_call.1} parent=1 // pred_check_branch
      %22 = sbr.rel (0) target = $region13
    $region12: #{tpu_custom_call.1} parent=1 // pred_region
      %23 = dma.done [#allocation3], 128
    $region13: #{tpu_custom_call.1} parent=1 // pred_fallthru
      _
    %v24 = vld [vmem:[#allocation2] sm:$0xff]
    %v25 = vld [vmem:[%s1] sm:$0x1]
    %s26 = smul.u32 0, 128
    %v27 = vlaneseq
    %v28 = vand.u32 %v27, 127
    %v29 = vstv %s26
    %v30 = vadd.s32 %v28, %v29
    %v32 = vlaneseq
    %v33 = vshrl.u32 %v32, 7
    %v34 = vsub.s32 0, %v33
    %v35 = vrot.slane %v25, %v34
    %37 = vset.pattern.permute.xlu0 0
    %38 = vperm.xlu0 %37, %v24
    %v39 = vpop.permute.xlu0 %38
    %vm40 = vcmp.eq.s32.totalorder %v39, %v30
    %v41 = vsel %vm40, %v35, 0.0
    %v42 = vadd.f32 %v41, 0.0
    %43 = vset.pattern.permute.xlu0 1
    %44 = vperm.xlu0 %43, %v24
    %v45 = vpop.permute.xlu0 %44
    %vm46 = vcmp.eq.s32.totalorder %v45, %v30
    %v47 = vsel %vm46, %v35, 0.0
    %v48 = vadd.f32 %v42, %v47
    %49 = vset.pattern.permute.xlu0 2
    %50 = vperm.xlu0 %49, %v24
    %v51 = vpop.permute.xlu0 %50
    %vm52 = vcmp.eq.s32.totalorder %v51, %v30
    %v53 = vsel %vm52, %v35, 0.0
    %v54 = vadd.f32 %v48, %v53
    %55 = vset.pattern.permute.xlu0 3
    %56 = vperm.xlu0 %55, %v24
    %v57 = vpop.permute.xlu0 %56
    %vm58 = vcmp.eq.s32.totalorder %v57, %v30
    %v59 = vsel %vm58, %v35, 0.0
    %v60 = vadd.f32 %v54, %v59
    %61 = vset.pattern.permute.xlu0 4
    %62 = vperm.xlu0 %61, %v24
    %v63 = vpop.permute.xlu0 %62
    %vm64 = vcmp.eq.s32.totalorder %v63, %v30
    %v65 = vsel %vm64, %v35, 0.0
    %v66 = vadd.f32 %v60, %v65
    %67 = vset.pattern.permute.xlu0 5
    %68 = vperm.xlu0 %67, %v24
    %v69 = vpop.permute.xlu0 %68
    %vm70 = vcmp.eq.s32.totalorder %v69, %v30
    %v71 = vsel %vm70, %v35, 0.0
    %v72 = vadd.f32 %v66, %v71
    %73 = vset.pattern.permute.xlu0 6
    %74 = vperm.xlu0 %73, %v24
    %v75 = vpop.permute.xlu0 %74
    %vm76 = vcmp.eq.s32.totalorder %v75, %v30
    %v77 = vsel %vm76, %v35, 0.0
    %v78 = vadd.f32 %v72, %v77
    %79 = vset.pattern.permute.xlu0 7
    %80 = vperm.xlu0 %79, %v24
    %v81 = vpop.permute.xlu0 %80
    %vm82 = vcmp.eq.s32.totalorder %v81, %v30
    %v83 = vsel %vm82, %v35, 0.0
    %v84 = vadd.f32 %v78, %v83
    %85 = vset.pattern.permute.xlu0 8
    %86 = vperm.xlu0 %85, %v24
    %v87 = vpop.permute.xlu0 %86
    %vm88 = vcmp.eq.s32.totalorder %v87, %v30
    %v89 = vsel %vm88, %v35, 0.0
    %v90 = vadd.f32 %v84, %v89
    %91 = vset.pattern.permute.xlu0 9
    %92 = vperm.xlu0 %91, %v24
    %v93 = vpop.permute.xlu0 %92
    %vm94 = vcmp.eq.s32.totalorder %v93, %v30
    %v95 = vsel %vm94, %v35, 0.0
    %v96 = vadd.f32 %v90, %v95
    %97 = vset.pattern.permute.xlu0 10
    %98 = vperm.xlu0 %97, %v24
    %v99 = vpop.permute.xlu0 %98
    %vm100 = vcmp.eq.s32.totalorder %v99, %v30
    %v101 = vsel %vm100, %v35, 0.0
    %v102 = vadd.f32 %v96, %v101
    %103 = vset.pattern.permute.xlu0 11
    %104 = vperm.xlu0 %103, %v24
    %v105 = vpop.permute.xlu0 %104
    %vm106 = vcmp.eq.s32.totalorder %v105, %v30
    %v107 = vsel %vm106, %v35, 0.0
    %v108 = vadd.f32 %v102, %v107
    %109 = vset.pattern.permute.xlu0 12
    %110 = vperm.xlu0 %109, %v24
    %v111 = vpop.permute.xlu0 %110
    %vm112 = vcmp.eq.s32.totalorder %v111, %v30
    %v113 = vsel %vm112, %v35, 0.0
    %v114 = vadd.f32 %v108, %v113
    %115 = vset.pattern.permute.xlu0 13
    %116 = vperm.xlu0 %115, %v24
    %v117 = vpop.permute.xlu0 %116
    %vm118 = vcmp.eq.s32.totalorder %v117, %v30
    %v119 = vsel %vm118, %v35, 0.0
    %v120 = vadd.f32 %v114, %v119
    %121 = vset.pattern.permute.xlu0 14
    %122 = vperm.xlu0 %121, %v24
    %v123 = vpop.permute.xlu0 %122
    %vm124 = vcmp.eq.s32.totalorder %v123, %v30
    %v125 = vsel %vm124, %v35, 0.0
    %v126 = vadd.f32 %v120, %v125
    %127 = vset.pattern.permute.xlu0 15
    %128 = vperm.xlu0 %127, %v24
    %v129 = vpop.permute.xlu0 %128
    %vm130 = vcmp.eq.s32.totalorder %v129, %v30
    %v131 = vsel %vm130, %v35, 0.0
    %v132 = vadd.f32 %v126, %v131
    %133 = vadd.xlane.f32.xlu0 %v132
    %v134 = vpop.xlane.xlu0 %133
    %p135 = scmp.eq.s32.totalorder 0, 0
    // Predicated region
    $region14: #{tpu_custom_call.1} parent=1 // pred_check
      %p136 = pneg %p135
    $region15: #{tpu_custom_call.1} parent=1 // pred_check_branch
      %138 = sbr.rel (%p136) target = $region17
    $region16: #{tpu_custom_call.1} parent=1 // pred_region
      %v140 = vlaneseq
      %v141 = vshrl.u32 %v140, 7
      %v142 = vsub.s32 %v28, %v141
      %v143 = vrot.slane %v134, %v142
      %vm145 = vcmask 57344
      %146 = vst.msk [vmem:[#allocation5] sm:$0x1] %vm145, %v143
    $region17: #{tpu_custom_call.1} parent=1 // pred_fallthru
      _
    %p147 = scmp.gt.s32.totalorder 0, 0
    // Predicated region
    $region18: #{tpu_custom_call.1} parent=1 // pred_check
      %p148 = pneg %p147
    $region19: #{tpu_custom_call.1} parent=1 // pred_check_branch
      %150 = sbr.rel (%p148) target = $region21
    $region20: #{tpu_custom_call.1} parent=1 // pred_region
      %v151 = vld [vmem:[#allocation5] sm:$0x1]
      %v153 = vlaneseq
      %v154 = vshrl.u32 %v153, 7
      %v155 = vsub.s32 0, %v154
      %v156 = vrot.slane %v134, %v155
      %v157 = vlaneseq
      %v158 = vshrl.u32 %v157, 7
      %v159 = vsub.s32 1, %v158
      %v160 = vrot.slane %v134, %v159
      %v161 = vlaneseq
      %v162 = vshrl.u32 %v161, 7
      %v163 = vsub.s32 2, %v162
      %v164 = vrot.slane %v134, %v163
      %v165 = vlaneseq
      %v166 = vshrl.u32 %v165, 7
      %v167 = vsub.s32 3, %v166
      %v168 = vrot.slane %v134, %v167
      %v169 = vlaneseq
      %v170 = vshrl.u32 %v169, 7
      %v171 = vsub.s32 4, %v170
      %v172 = vrot.slane %v134, %v171
      %v173 = vlaneseq
      %v174 = vshrl.u32 %v173, 7
      %v175 = vsub.s32 5, %v174
      %v176 = vrot.slane %v134, %v175
      %v177 = vlaneseq
      %v178 = vshrl.u32 %v177, 7
      %v179 = vsub.s32 6, %v178
      %v180 = vrot.slane %v134, %v179
      %v181 = vlaneseq
      %v182 = vshrl.u32 %v181, 7
      %v183 = vsub.s32 7, %v182
      %v184 = vrot.slane %v134, %v183
      %v185 = vcombine.low %v156, %v160
      %v186 = vcombine.low %v164, %v168
      %v187 = vcombine.low %v172, %v176
      %v188 = vcombine.low %v180, %v184
      %v190 = vunpack.c.l.s4 1966171168
      %v191 = vunpack.c.0.s8 %v190
      %v192 = vlaneseq
      %v193 = vshrl.u32 %v192, 7
      %v194 = vsub.s32 %v191, %v193
      %v195 = vrot.slane %v185, %v194
      %v197 = vunpack.c.l.s4 1966171168
      %v198 = vunpack.c.0.s8 %v197
      %v199 = vlaneseq
      %v200 = vshrl.u32 %v199, 7
      %v201 = vsub.s32 %v198, %v200
      %v202 = vrot.slane %v186, %v201
      %v204 = vunpack.c.l.s4 1966171168
      %v205 = vunpack.c.0.s8 %v204
      %v206 = vlaneseq
      %v207 = vshrl.u32 %v206, 7
      %v208 = vsub.s32 %v205, %v207
      %v209 = vrot.slane %v187, %v208
      %v211 = vunpack.c.l.s4 1966171168
      %v212 = vunpack.c.0.s8 %v211
      %v213 = vlaneseq
      %v214 = vshrl.u32 %v213, 7
      %v215 = vsub.s32 %v212, %v214
      %v216 = vrot.slane %v188, %v215
      %v217 = vcombine.low %v195, %v202
      %v218 = vcombine.low %v209, %v216
      %v220 = vunpack.c.l.s4 1966171168
      %v221 = vunpack.c.0.s8 %v220
      %v222 = vlaneseq
      %v223 = vshrl.u32 %v222, 7
      %v224 = vsub.s32 %v221, %v223
      %v225 = vrot.slane %v217, %v224
      %v227 = vunpack.c.l.s4 1966171168
      %v228 = vunpack.c.0.s8 %v227
      %v229 = vlaneseq
      %v230 = vshrl.u32 %v229, 7
      %v231 = vsub.s32 %v228, %v230
      %v232 = vrot.slane %v218, %v231
      %v233 = vcombine.low %v225, %v232
      %234 = vset.pattern.permute.xlu0 0
      %235 = vperm.xlu0 %234, %v233
      %v236 = vpop.permute.xlu0 %235
      %v237 = vlaneseq
      %v238 = vshrl.u32 %v237, 7
      %v239 = vsub.s32 %v28, %v238
      %v240 = vrot.slane %v236, %v239
      %v242 = vunpack.c.l.s4 1966171168
      %v243 = vunpack.c.0.s8 %v242
      %v244 = vlaneseq
      %v245 = vshrl.u32 %v244, 7
      %v246 = vsub.s32 %v243, %v245
      %v247 = vrot.slane %v240, %v246
      %v249 = vunpack.c.l.s4 1966171168
      %v250 = vunpack.c.0.s8 %v249
      %v251 = vlaneseq
      %v252 = vshrl.u32 %v251, 7
      %v253 = vsub.s32 %v250, %v252
      %v254 = vrot.slane %v247, %v253
      %v256 = vadd.f32 %v151, %v254
      %vm257 = vcmask 57344
      %258 = vst.msk [vmem:[#allocation5] sm:$0x1] %vm257, %v256
    $region21: #{tpu_custom_call.1} parent=1 // pred_fallthru
      _
    // Predicated region
    $region22: #{tpu_custom_call.1} parent=1 // pred_check
      _
    $region23: #{tpu_custom_call.1} parent=1 // pred_check_branch
      %260 = sbr.rel (0) target = $region25
    $region24: #{tpu_custom_call.1} parent=1 // pred_region
      %s262 = ssub.s32 16, 16
      %263 = vsyncadd [#allocation4], %s262
      %s265 = sshll.u32 [#allocation5], 4
      %s266 = int_to_ptr.vmem [resolvable:$true] %s265
      %268 = dma.vmem_to_hbm [thread:$0]  %s266, 16, %s2, [#allocation4]
    $region25: #{tpu_custom_call.1} parent=1 // pred_fallthru
      _
    // Predicated region
    $region26: #{tpu_custom_call.1} parent=1 // pred_check
      _
    $region27: #{tpu_custom_call.1} parent=1 // pred_check_branch
      %270 = sbr.rel (0) target = $region29
    $region28: #{tpu_custom_call.1} parent=1 // pred_region
      %271 = dma.done [#allocation4], 16
    $region29: #{tpu_custom_call.1} parent=1 // pred_fallthru
      _
    %272 = vsyncpa [#allocation3], 1
    %273 = vsyncpa [#allocation4], 1

// kernel: tpu_custom_call.1
$region0: #{tpu_custom_call.1}
  #allocation0 [shape = 'u32[]', space=smem, size = 0x4, offset = 0x4, fixed_abs, tag = 'smem constant byte address 0x4 - core index']
  #allocation1 [shape = 'u32[144,128]{1,0:T(1,128)}', space=vmem, size = 0x12000, scoped, tag = 'internal scratch']
  %s0 = inlined_call_operand.hbm [shape: s32[8,16], index: 0, kind: input, shape index: {}]
  %s1 = inlined_call_operand.vmem [shape: f32[1,128], index: 1, kind: input, shape index: {}]
  %s2 = inlined_call_operand.hbm [shape: f32[1,8], index: 2, kind: output, shape index: {}]
  %s3 = sld [smem:[#allocation0]]
  $region30: #{tpu_custom_call.1} parent=0
    _
  %s5 = ssub.s32 1, %s3
  %s6 = scalar_select 0, %s5, %s3
  $region1: #{tpu_custom_call.1} parent=0
    #allocation2 [shape = 'u8[4096]{0}', space=vmem, size = 0x1000, scoped, tag = 'input window, operand 0, single buffered']
    #allocation3 [shape = 's32[1]{0}', space=sflag, size = 0x4, scoped, tag = 'scoped memory for tpu_custom_call.1']
    #allocation4 [shape = 's32[1]{0}', space=sflag, size = 0x4, scoped, tag = 'scoped memory for tpu_custom_call.1']
    #allocation5 [shape = 'u8[512]{0}', space=vmem, size = 0x400, scoped, tag = 'output window, operand 0, single buffered']
    %7 = vsyncpa [#allocation3], 0
    %8 = vsyncpa [#allocation4], 0
    // Predicated region
    $region2: #{tpu_custom_call.1} parent=1 // pred_check
      _
    $region3: #{tpu_custom_call.1} parent=1 // pred_check_branch
      %10 = sbr.rel (0) target = $region5
    $region4: #{tpu_custom_call.1} parent=1 // pred_region
      %s12 = ssub.s32 128, 128
      %13 = vsyncadd [#allocation3], %s12
      %s15 = sshll.u32 [#allocation2], 4
      %s16 = int_to_ptr.vmem [resolvable:$true] %s15
      %18 = dma.hbm_to_vmem [thread:$0]  %s0, 128, %s16, [#allocation3]
    $region5: #{tpu_custom_call.1} parent=1 // pred_fallthru
      _
    // Predicated region
    $region6: #{tpu_custom_call.1} parent=1 // pred_check
      _
    $region7: #{tpu_custom_call.1} parent=1 // pred_check_branch
      %20 = sbr.rel (0) target = $region9
    $region8: #{tpu_custom_call.1} parent=1 // pred_region
      _
    $region9: #{tpu_custom_call.1} parent=1 // pred_fallthru
      _
    // Predicated region
    $region10: #{tpu_custom_call.1} parent=1 // pred_check
      _
    $region11: #{tpu_custom_call.1} parent=1 // pred_check_branch
      %22 = sbr.rel (0) target = $region13
    $region12: #{tpu_custom_call.1} parent=1 // pred_region
      %23 = dma.done [#allocation3], 128
    $region13: #{tpu_custom_call.1} parent=1 // pred_fallthru
      _
    %v24 = vld [vmem:[#allocation2] sm:$0xff]
    %v25 = vld [vmem:[%s1] sm:$0x1]
    %s26 = smul.u32 0, 128
    %v27 = vlaneseq
    %v28 = vand.u32 %v27, 127
    %v29 = vstv %s26
    %v30 = vadd.s32 %v28, %v29
    %v32 = vlaneseq
    %v33 = vshrl.u32 %v32, 7
    %v34 = vsub.s32 0, %v33
    %v35 = vrot.slane %v25, %v34
    %37 = vset.pattern.permute.xlu0 0
    %38 = vperm.xlu0 %37, %v24
    %v39 = vpop.permute.xlu0 %38
    %vm40 = vcmp.eq.s32.totalorder %v39, %v30
    %v41 = vsel %vm40, %v35, 0.0
    %v42 = vadd.f32 %v41, 0.0
    %43 = vset.pattern.permute.xlu0 1
    %44 = vperm.xlu0 %43, %v24
    %v45 = vpop.permute.xlu0 %44
    %vm46 = vcmp.eq.s32.totalorder %v45, %v30
    %v47 = vsel %vm46, %v35, 0.0
    %v48 = vadd.f32 %v42, %v47
    %49 = vset.pattern.permute.xlu0 2
    %50 = vperm.xlu0 %49, %v24
    %v51 = vpop.permute.xlu0 %50
    %vm52 = vcmp.eq.s32.totalorder %v51, %v30
    %v53 = vsel %vm52, %v35, 0.0
    %v54 = vadd.f32 %v48, %v53
    %55 = vset.pattern.permute.xlu0 3
    %56 = vperm.xlu0 %55, %v24
    %v57 = vpop.permute.xlu0 %56
    %vm58 = vcmp.eq.s32.totalorder %v57, %v30
    %v59 = vsel %vm58, %v35, 0.0
    %v60 = vadd.f32 %v54, %v59
    %61 = vset.pattern.permute.xlu0 4
    %62 = vperm.xlu0 %61, %v24
    %v63 = vpop.permute.xlu0 %62
    %vm64 = vcmp.eq.s32.totalorder %v63, %v30
    %v65 = vsel %vm64, %v35, 0.0
    %v66 = vadd.f32 %v60, %v65
    %67 = vset.pattern.permute.xlu0 5
    %68 = vperm.xlu0 %67, %v24
    %v69 = vpop.permute.xlu0 %68
    %vm70 = vcmp.eq.s32.totalorder %v69, %v30
    %v71 = vsel %vm70, %v35, 0.0
    %v72 = vadd.f32 %v66, %v71
    %73 = vset.pattern.permute.xlu0 6
    %74 = vperm.xlu0 %73, %v24
    %v75 = vpop.permute.xlu0 %74
    %vm76 = vcmp.eq.s32.totalorder %v75, %v30
    %v77 = vsel %vm76, %v35, 0.0
    %v78 = vadd.f32 %v72, %v77
    %79 = vset.pattern.permute.xlu0 7
    %80 = vperm.xlu0 %79, %v24
    %v81 = vpop.permute.xlu0 %80
    %vm82 = vcmp.eq.s32.totalorder %v81, %v30
    %v83 = vsel %vm82, %v35, 0.0
    %v84 = vadd.f32 %v78, %v83
    %85 = vset.pattern.permute.xlu0 8
    %86 = vperm.xlu0 %85, %v24
    %v87 = vpop.permute.xlu0 %86
    %vm88 = vcmp.eq.s32.totalorder %v87, %v30
    %v89 = vsel %vm88, %v35, 0.0
    %v90 = vadd.f32 %v84, %v89
    %91 = vset.pattern.permute.xlu0 9
    %92 = vperm.xlu0 %91, %v24
    %v93 = vpop.permute.xlu0 %92
    %vm94 = vcmp.eq.s32.totalorder %v93, %v30
    %v95 = vsel %vm94, %v35, 0.0
    %v96 = vadd.f32 %v90, %v95
    %97 = vset.pattern.permute.xlu0 10
    %98 = vperm.xlu0 %97, %v24
    %v99 = vpop.permute.xlu0 %98
    %vm100 = vcmp.eq.s32.totalorder %v99, %v30
    %v101 = vsel %vm100, %v35, 0.0
    %v102 = vadd.f32 %v96, %v101
    %103 = vset.pattern.permute.xlu0 11
    %104 = vperm.xlu0 %103, %v24
    %v105 = vpop.permute.xlu0 %104
    %vm106 = vcmp.eq.s32.totalorder %v105, %v30
    %v107 = vsel %vm106, %v35, 0.0
    %v108 = vadd.f32 %v102, %v107
    %109 = vset.pattern.permute.xlu0 12
    %110 = vperm.xlu0 %109, %v24
    %v111 = vpop.permute.xlu0 %110
    %vm112 = vcmp.eq.s32.totalorder %v111, %v30
    %v113 = vsel %vm112, %v35, 0.0
    %v114 = vadd.f32 %v108, %v113
    %115 = vset.pattern.permute.xlu0 13
    %116 = vperm.xlu0 %115, %v24
    %v117 = vpop.permute.xlu0 %116
    %vm118 = vcmp.eq.s32.totalorder %v117, %v30
    %v119 = vsel %vm118, %v35, 0.0
    %v120 = vadd.f32 %v114, %v119
    %121 = vset.pattern.permute.xlu0 14
    %122 = vperm.xlu0 %121, %v24
    %v123 = vpop.permute.xlu0 %122
    %vm124 = vcmp.eq.s32.totalorder %v123, %v30
    %v125 = vsel %vm124, %v35, 0.0
    %v126 = vadd.f32 %v120, %v125
    %127 = vset.pattern.permute.xlu0 15
    %128 = vperm.xlu0 %127, %v24
    %v129 = vpop.permute.xlu0 %128
    %vm130 = vcmp.eq.s32.totalorder %v129, %v30
    %v131 = vsel %vm130, %v35, 0.0
    %v132 = vadd.f32 %v126, %v131
    %133 = vadd.xlane.f32.xlu0 %v132
    %v134 = vpop.xlane.xlu0 %133
    %p135 = scmp.eq.s32.totalorder 0, 0
    // Predicated region
    $region14: #{tpu_custom_call.1} parent=1 // pred_check
      %p136 = pneg %p135
    $region15: #{tpu_custom_call.1} parent=1 // pred_check_branch
      %138 = sbr.rel (%p136) target = $region17
    $region16: #{tpu_custom_call.1} parent=1 // pred_region
      %v140 = vlaneseq
      %v141 = vshrl.u32 %v140, 7
      %v142 = vsub.s32 %v28, %v141
      %v143 = vrot.slane %v134, %v142
      %vm145 = vcmask 57344
      %146 = vst.msk [vmem:[#allocation5] sm:$0x1] %vm145, %v143
    $region17: #{tpu_custom_call.1} parent=1 // pred_fallthru
      _
    %p147 = scmp.gt.s32.totalorder 0, 0
    // Predicated region
    $region18: #{tpu_custom_call.1} parent=1 // pred_check
      %p148 = pneg %p147
    $region19: #{tpu_custom_call.1} parent=1 // pred_check_branch
      %150 = sbr.rel (%p148) target = $region21
    $region20: #{tpu_custom_call.1} parent=1 // pred_region
      %v151 = vld [vmem:[#allocation5] sm:$0x1]
      %v153 = vlaneseq
      %v154 = vshrl.u32 %v153, 7
      %v155 = vsub.s32 0, %v154
      %v156 = vrot.slane %v134, %v155
      %v157 = vlaneseq
      %v158 = vshrl.u32 %v157, 7
      %v159 = vsub.s32 1, %v158
      %v160 = vrot.slane %v134, %v159
      %v161 = vlaneseq
      %v162 = vshrl.u32 %v161, 7
      %v163 = vsub.s32 2, %v162
      %v164 = vrot.slane %v134, %v163
      %v165 = vlaneseq
      %v166 = vshrl.u32 %v165, 7
      %v167 = vsub.s32 3, %v166
      %v168 = vrot.slane %v134, %v167
      %v169 = vlaneseq
      %v170 = vshrl.u32 %v169, 7
      %v171 = vsub.s32 4, %v170
      %v172 = vrot.slane %v134, %v171
      %v173 = vlaneseq
      %v174 = vshrl.u32 %v173, 7
      %v175 = vsub.s32 5, %v174
      %v176 = vrot.slane %v134, %v175
      %v177 = vlaneseq
      %v178 = vshrl.u32 %v177, 7
      %v179 = vsub.s32 6, %v178
      %v180 = vrot.slane %v134, %v179
      %v181 = vlaneseq
      %v182 = vshrl.u32 %v181, 7
      %v183 = vsub.s32 7, %v182
      %v184 = vrot.slane %v134, %v183
      %v185 = vcombine.low %v156, %v160
      %v186 = vcombine.low %v164, %v168
      %v187 = vcombine.low %v172, %v176
      %v188 = vcombine.low %v180, %v184
      %v190 = vunpack.c.l.s4 1966171168
      %v191 = vunpack.c.0.s8 %v190
      %v192 = vlaneseq
      %v193 = vshrl.u32 %v192, 7
      %v194 = vsub.s32 %v191, %v193
      %v195 = vrot.slane %v185, %v194
      %v197 = vunpack.c.l.s4 1966171168
      %v198 = vunpack.c.0.s8 %v197
      %v199 = vlaneseq
      %v200 = vshrl.u32 %v199, 7
      %v201 = vsub.s32 %v198, %v200
      %v202 = vrot.slane %v186, %v201
      %v204 = vunpack.c.l.s4 1966171168
      %v205 = vunpack.c.0.s8 %v204
      %v206 = vlaneseq
      %v207 = vshrl.u32 %v206, 7
      %v208 = vsub.s32 %v205, %v207
      %v209 = vrot.slane %v187, %v208
      %v211 = vunpack.c.l.s4 1966171168
      %v212 = vunpack.c.0.s8 %v211
      %v213 = vlaneseq
      %v214 = vshrl.u32 %v213, 7
      %v215 = vsub.s32 %v212, %v214
      %v216 = vrot.slane %v188, %v215
      %v217 = vcombine.low %v195, %v202
      %v218 = vcombine.low %v209, %v216
      %v220 = vunpack.c.l.s4 1966171168
      %v221 = vunpack.c.0.s8 %v220
      %v222 = vlaneseq
      %v223 = vshrl.u32 %v222, 7
      %v224 = vsub.s32 %v221, %v223
      %v225 = vrot.slane %v217, %v224
      %v227 = vunpack.c.l.s4 1966171168
      %v228 = vunpack.c.0.s8 %v227
      %v229 = vlaneseq
      %v230 = vshrl.u32 %v229, 7
      %v231 = vsub.s32 %v228, %v230
      %v232 = vrot.slane %v218, %v231
      %v233 = vcombine.low %v225, %v232
      %234 = vset.pattern.permute.xlu0 0
      %235 = vperm.xlu0 %234, %v233
      %v236 = vpop.permute.xlu0 %235
      %v237 = vlaneseq
      %v238 = vshrl.u32 %v237, 7
      %v239 = vsub.s32 %v28, %v238
      %v240 = vrot.slane %v236, %v239
      %v242 = vunpack.c.l.s4 1966171168
      %v243 = vunpack.c.0.s8 %v242
      %v244 = vlaneseq
      %v245 = vshrl.u32 %v244, 7
      %v246 = vsub.s32 %v243, %v245
      %v247 = vrot.slane %v240, %v246
      %v249 = vunpack.c.l.s4 1966171168
      %v250 = vunpack.c.0.s8 %v249
      %v251 = vlaneseq
      %v252 = vshrl.u32 %v251, 7
      %v253 = vsub.s32 %v250, %v252
      %v254 = vrot.slane %v247, %v253
      %v256 = vadd.f32 %v151, %v254
      %vm257 = vcmask 57344
      %258 = vst.msk [vmem:[#allocation5] sm:$0x1] %vm257, %v256
    $region21: #{tpu_custom_call.1} parent=1 // pred_fallthru
      _
    // Predicated region
    $region22: #{tpu_custom_call.1} parent=1 // pred_check
      _
    $region23: #{tpu_custom_call.1} parent=1 // pred_check_branch
      %260 = sbr.rel (0) target = $region25
    $region24: #{tpu_custom_call.1} parent=1 // pred_region
      %s262 = ssub.s32 16, 16
      %263 = vsyncadd [#allocation4], %s262
      %s265 = sshll.u32 [#allocation5], 4
      %s266 = int_to_ptr.vmem [resolvable:$true] %s265
      %268 = dma.vmem_to_hbm [thread:$0]  %s266, 16, %s2, [#allocation4]
    $region25: #{tpu_custom_call.1} parent=1 // pred_fallthru
      _
    // Predicated region
    $region26: #{tpu_custom_call.1} parent=1 // pred_check
      _
    $region27: #{tpu_custom_call.1} parent=1 // pred_check_branch
      %270 = sbr.rel (0) target = $region29
    $region28: #{tpu_custom_call.1} parent=1 // pred_region
      %271 = dma.done [#allocation4], 16
    $region29: #{tpu_custom_call.1} parent=1 // pred_fallthru
      _
    %272 = vsyncpa [#allocation3], 1
    %273 = vsyncpa [#allocation4], 1

</llo_original>
